<compile_context>
chip_gen: v5e
topology: v5e:2x2
jax: 0.10.0
libtpu: 0.0.40
codegen_flags: <defaults>
</compile_context>

<pallas_src>
import functools
import math

import jax
import jax.numpy as jnp
import numpy as np
from jax.experimental import pallas as pl
from jax.experimental.pallas import tpu as pltpu


def _round_up(x, m):
    return ((x + m - 1) // m) * m


def _vmem_limit(streamed_block_bytes, resident_bytes):
    # double-buffered streamed blocks + resident weights/scratch + headroom,
    # clamped to [32 MiB, 64 MiB] (64 MiB = v7x physical VMEM per TC).
    est = 2 * streamed_block_bytes + resident_bytes + (4 << 20)
    return int(min(64 << 20, max(32 << 20, est)))


# ---------------------------------------------------------------------------
# Pallas kernels
# ---------------------------------------------------------------------------
def _wn_layer_kernel(*refs, k, dil, pad, hidden, is_last, has_g):
    """One fused WN layer: dilated conv -> gate -> 1x1 conv -> residual/skip."""
    if has_g:
        (x0_ref, x1_ref, g_ref, msk_ref, skip_ref,
         w_in_ref, b_in_ref, w_rs_ref, b_rs_ref,
         x_out_ref, skip_out_ref, win_ref) = refs
    else:
        (x0_ref, x1_ref, msk_ref, skip_ref,
         w_in_ref, b_in_ref, w_rs_ref, b_rs_ref,
         x_out_ref, skip_out_ref, win_ref) = refs
        g_ref = None

    tt = x0_ref.shape[1]

    # Stitch the two adjacent (already zero-padded) time tiles into a
    # (2*TT, H) window so every dilated tap (offset 0 .. (k-1)*dil <= TT)
    # lives in VMEM -- no HBM im2col, x is read once per tile pair.
    win_ref[0:tt, :] = x0_ref[0]
    win_ref[tt:2 * tt, :] = x1_ref[0]
    win = win_ref[...]                                   # (2*TT, H) f32

    # Dilated (k,) conv as k accumulated MXU dots (bf16 x bf16 -> f32).
    acc = jnp.zeros((tt, 2 * hidden), dtype=jnp.float32)
    for j in range(k):
        tap = win[j * dil:j * dil + tt, :].astype(jnp.bfloat16)
        acc = acc + jnp.dot(tap, w_in_ref[j],
                            preferred_element_type=jnp.float32)
    acc = acc + b_in_ref[...]
    if g_ref is not None:
        acc = acc + g_ref[0]

    # fused_add_tanh_sigmoid_multiply (f32 on VPU/EUP).
    t_act = jnp.tanh(acc[:, :hidden])
    s_act = 1.0 / (1.0 + jnp.exp(-acc[:, hidden:]))
    acts = t_act * s_act
    # TODO(synk): dropout(p=0.2) omitted (inference-mode identity).

    # 1x1 res/skip conv.
    rs = jnp.dot(acts.astype(jnp.bfloat16), w_rs_ref[...],
                 preferred_element_type=jnp.float32) + b_rs_ref[...]

    x_center = win[pad:pad + tt, :]                      # un-shifted residual input
    if is_last:
        x_out_ref[0] = x_center                          # passthrough (unused)
        skip_out_ref[0] = skip_ref[0] + rs               # rs has H channels here
    else:
        msk = msk_ref[0]                                 # (TT, 1)
        x_out_ref[0] = (x_center + rs[:, :hidden]) * msk
        skip_out_ref[0] = skip_ref[0] + rs[:, hidden:]


def _pointwise_conv_kernel(x_ref, w_ref, b_ref, o_ref):
    """1x1 Conv1d on channels-last tiles: (TT, Cin) @ (Cin, Cout) + bias."""
    y = jnp.dot(x_ref[0].astype(jnp.bfloat16), w_ref[...],
                preferred_element_type=jnp.float32) + b_ref[...]
    o_ref[0] = y.astype(o_ref.dtype)


def _proj_sample_kernel(h_ref, msk_ref, eps_ref, w_ref, b_ref,
                        z_ref, mu_ref, logs_ref, *, out_channels, temp):
    """proj(enc*mask)*mask, split into (m, logs), z = (m + exp(logs)*t*eps)*mask."""
    msk = msk_ref[0]                                     # (TT, 1)
    enc = h_ref[0] * msk                                 # WN output * mask
    stats = jnp.dot(enc.astype(jnp.bfloat16), w_ref[...],
                    preferred_element_type=jnp.float32) + b_ref[...]
    stats = stats * msk
    mu = stats[:, :out_channels]
    logs = stats[:, out_channels:]
    z = (mu + jnp.exp(logs) * temp * eps_ref[0]) * msk
    z_ref[0] = z
    mu_ref[0] = mu
    logs_ref[0] = logs


# ---------------------------------------------------------------------------
# Wrappers
# ---------------------------------------------------------------------------
def _pointwise_conv(x, w_bf16, b, tile):
    """x: (B, L, Cin) f32 -> (B, L, Cout) f32."""
    B, L, Cin = x.shape
    Cout = w_bf16.shape[1]
    nt = L // tile
    streamed = tile * (Cin + Cout) * 4
    resident = Cin * Cout * 2 + Cout * 4
    return pl.pallas_call(
        _pointwise_conv_kernel,
        grid=(B, nt),
        in_specs=[
            pl.BlockSpec((1, tile, Cin), lambda bb, ii: (bb, ii, 0)),
            pl.BlockSpec((Cin, Cout), lambda bb, ii: (0, 0)),
            pl.BlockSpec((1, Cout), lambda bb, ii: (0, 0)),
        ],
        out_specs=pl.BlockSpec((1, tile, Cout), lambda bb, ii: (bb, ii, 0)),
        out_shape=jax.ShapeDtypeStruct((B, L, Cout), jnp.float32),
        compiler_params=pltpu.CompilerParams(
            dimension_semantics=("parallel", "parallel"),
            vmem_limit_bytes=_vmem_limit(streamed, resident)),
    )(x, w_bf16, b)


def _wn_layer(x, skip, mask_p, g_l, layer_p, *, k, dil, pad, tile, is_last):
    B, L, H = x.shape
    nt = L // tile
    rsc = layer_p["rs_w"].shape[1]
    has_g = g_l is not None

    # Zero-pad time so every output tile's receptive field lives in exactly
    # two adjacent (1, TT, H) blocks of the padded array.
    x_pad = jnp.pad(x, ((0, 0), (pad, tile - pad), (0, 0)))

    in_specs = [
        pl.BlockSpec((1, tile, H), lambda bb, ii: (bb, ii, 0)),
        pl.BlockSpec((1, tile, H), lambda bb, ii: (bb, ii + 1, 0)),
    ]
    args = [x_pad, x_pad]
    if has_g:
        in_specs.append(pl.BlockSpec((1, tile, 2 * H), lambda bb, ii: (bb, ii, 0)))
        args.append(g_l)
    in_specs += [
        pl.BlockSpec((1, tile, 1), lambda bb, ii: (bb, ii, 0)),   # mask
        pl.BlockSpec((1, tile, H), lambda bb, ii: (bb, ii, 0)),   # skip (carry in)
        pl.BlockSpec((k, H, 2 * H), lambda bb, ii: (0, 0, 0)),    # resident weights
        pl.BlockSpec((1, 2 * H), lambda bb, ii: (0, 0)),
        pl.BlockSpec((H, rsc), lambda bb, ii: (0, 0)),
        pl.BlockSpec((1, rsc), lambda bb, ii: (0, 0)),
    ]
    args += [mask_p, skip, layer_p["in_w"], layer_p["in_b"],
             layer_p["rs_w"], layer_p["rs_b"]]

    streamed = tile * (2 * H + (2 * H if has_g else 0) + 1 + H + 2 * H) * 4
    resident = ((k * H * 2 * H + H * rsc) * 2          # bf16 weights
                + (2 * H + rsc) * 4                    # f32 biases
                + 2 * tile * H * 4)                    # window scratch

    kern = functools.partial(_wn_layer_kernel, k=k, dil=dil, pad=pad,
                             hidden=H, is_last=is_last, has_g=has_g)
    x_new, skip_new = pl.pallas_call(
        kern,
        grid=(B, nt),
        in_specs=in_specs,
        out_specs=(pl.BlockSpec((1, tile, H), lambda bb, ii: (bb, ii, 0)),
                   pl.BlockSpec((1, tile, H), lambda bb, ii: (bb, ii, 0))),
        out_shape=(jax.ShapeDtypeStruct((B, L, H), jnp.float32),
                   jax.ShapeDtypeStruct((B, L, H), jnp.float32)),
        scratch_shapes=[pltpu.VMEM((2 * tile, H), jnp.float32)],
        compiler_params=pltpu.CompilerParams(
            dimension_semantics=("parallel", "parallel"),
            vmem_limit_bytes=_vmem_limit(streamed, resident)),
    )(*args)
    return x_new, skip_new


def prior_nn_forward(x, mask, params, g=None, t=1.0, eps=None, tile=128):
    """PriorNN forward.  x: (B, H, T), mask: (B, 1, T), g: (B, gin, T) or None,
    eps: (B, out_channels, T) standard-normal noise (reparameterization).
    Returns (z, m, logs, mask) in PyTorch's (B, C, T) layout."""
    cfg = params["config"]
    H, OC = cfg["hidden_channels"], cfg["out_channels"]
    k, dr, n_layers = cfg["kernel_size"], cfg["dilation_rate"], cfg["n_layers"]
    B, Cx, T = x.shape
    assert Cx == H

    dils = [dr ** i for i in range(n_layers)]
    pads = [d * (k - 1) // 2 for d in dils]
    tile = _round_up(max(tile, 2 * max(pads)), 8)
    L = _round_up(T, tile)
    nt = L // tile

    def to_tl(a):  # (B, C, T) -> channels-last, zero-padded to L time steps
        a = jnp.transpose(a, (0, 2, 1)).astype(jnp.float32)
        return jnp.pad(a, ((0, 0), (0, L - T), (0, 0)))

    xc = to_tl(x)                        # (B, L, H)
    mask_p = to_tl(mask)                 # (B, L, 1), zero beyond T

    g_cond = None
    if g is not None:
        g_cond = _pointwise_conv(to_tl(g), params["cond_w"], params["cond_b"], tile)

    if eps is None:
        eps = jnp.zeros((B, OC, T), jnp.float32)
    eps_p = to_tl(eps)                   # (B, L, OC)

    skip = jnp.zeros((B, L, H), jnp.float32)
    for i in range(n_layers):
        g_l = None
        if g_cond is not None:
            g_l = g_cond[:, :, i * 2 * H:(i + 1) * 2 * H]
        xc, skip = _wn_layer(xc, skip, mask_p, g_l, params["layers"][i],
                             k=k, dil=dils[i], pad=pads[i], tile=tile,
                             is_last=(i == n_layers - 1))

    streamed = tile * (H + 1 + OC + 3 * OC) * 4
    resident = H * 2 * OC * 2 + 2 * OC * 4
    z, m, logs = pl.pallas_call(
        functools.partial(_proj_sample_kernel, out_channels=OC, temp=float(t)),
        grid=(B, nt),
        in_specs=[
            pl.BlockSpec((1, tile, H), lambda bb, ii: (bb, ii, 0)),
            pl.BlockSpec((1, tile, 1), lambda bb, ii: (bb, ii, 0)),
            pl.BlockSpec((1, tile, OC), lambda bb, ii: (bb, ii, 0)),
            pl.BlockSpec((H, 2 * OC), lambda bb, ii: (0, 0)),
            pl.BlockSpec((1, 2 * OC), lambda bb, ii: (0, 0)),
        ],
        out_specs=(pl.BlockSpec((1, tile, OC), lambda bb, ii: (bb, ii, 0)),) * 3,
        out_shape=(jax.ShapeDtypeStruct((B, L, OC), jnp.float32),) * 3,
        compiler_params=pltpu.CompilerParams(
            dimension_semantics=("parallel", "parallel"),
            vmem_limit_bytes=_vmem_limit(streamed, resident)),
    )(skip, mask_p, eps_p, params["proj_w"], params["proj_b"])

    def to_ct(a):  # back to PyTorch (B, C, T)
        return jnp.transpose(a[:, :T, :], (0, 2, 1))

    return to_ct(z), to_ct(m), to_ct(logs), mask


# ---------------------------------------------------------------------------
# Parameters: raw PyTorch-layout init + one-time kernel-layout conversion.
# (weight_norm at init is identity: g == ||v||, so raw weights are exact.)
# ---------------------------------------------------------------------------
def init_params(key, *, hidden_channels, out_channels, kernel_size,
                dilation_rate, n_layers, gin_channels=0):
    def conv_init(kk, cout, cin, ksz):
        kw, kb = jax.random.split(kk)
        bound = 1.0 / math.sqrt(cin * ksz)
        w = jax.random.uniform(kw, (cout, cin, ksz), jnp.float32, -bound, bound)
        b = jax.random.uniform(kb, (cout,), jnp.float32, -bound, bound)
        return w, b

    raw = {"hidden_channels": hidden_channels, "out_channels": out_channels,
           "kernel_size": kernel_size, "dilation_rate": dilation_rate,
           "n_layers": n_layers, "gin_channels": gin_channels,
           "in": [], "rs": []}
    H = hidden_channels
    for i in range(n_layers):
        key, k1, k2 = jax.random.split(key, 3)
        raw["in"].append(conv_init(k1, 2 * H, H, kernel_size))
        rsc = 2 * H if i < n_layers - 1 else H
        raw["rs"].append(conv_init(k2, rsc, H, 1))
    if gin_channels:
        key, kc = jax.random.split(key)
        raw["cond"] = conv_init(kc, 2 * H * n_layers, gin_channels, 1)
    key, kp = jax.random.split(key)
    raw["proj"] = conv_init(kp, 2 * out_channels, H, 1)
    return raw


def prepare_params(raw):
    """Hoisted one-time conversion: matmul-layout bf16 weights, (1, Cout) f32 biases."""
    p = {"config": {kk: raw[kk] for kk in
                    ("hidden_channels", "out_channels", "kernel_size",
                     "dilation_rate", "n_layers")},
         "layers": []}
    for (wi, bi), (wr, br) in zip(raw["in"], raw["rs"]):
        p["layers"].append({
            "in_w": jnp.transpose(wi, (2, 1, 0)).astype(jnp.bfloat16),   # (k, H, 2H)
            "in_b": bi.reshape(1, -1).astype(jnp.float32),
            "rs_w": jnp.transpose(wr[:, :, 0], (1, 0)).astype(jnp.bfloat16),  # (H, RSC)
            "rs_b": br.reshape(1, -1).astype(jnp.float32),
        })
    if "cond" in raw:
        wc, bc = raw["cond"]
        p["cond_w"] = jnp.transpose(wc[:, :, 0], (1, 0)).astype(jnp.bfloat16)
        p["cond_b"] = bc.reshape(1, -1).astype(jnp.float32)
    wp, bp = raw["proj"]
    p["proj_w"] = jnp.transpose(wp[:, :, 0], (1, 0)).astype(jnp.bfloat16)     # (H, 2*OC)
    p["proj_b"] = bp.reshape(1, -1).astype(jnp.float32)
    return p


# ---------------------------------------------------------------------------
# Pure-JAX f32 reference (lax.conv) for correctness checking.
# ---------------------------------------------------------------------------
def _conv1d_ref(x, w, b, dilation=1, padding=0):
    y = jax.lax.conv_general_dilated(
        x, w, window_strides=(1,), padding=((padding, padding),),
        rhs_dilation=(dilation,), dimension_numbers=("NCH", "OIH", "NCH"),
        precision=jax.lax.Precision.HIGHEST)
    return y + b[None, :, None]


def ref_forward(x, mask, raw, g=None, t=1.0, eps=None):
    H, OC = raw["hidden_channels"], raw["out_channels"]
    k, dr, n_layers = raw["kernel_size"], raw["dilation_rate"], raw["n_layers"]
    out = jnp.zeros_like(x)
    g_cond = _conv1d_ref(g, *raw["cond"]) if g is not None else None
    xc = x
    for i in range(n_layers):
        dil = dr ** i
        pad = dil * (k - 1) // 2
        in_act = _conv1d_ref(xc, raw["in"][i][0], raw["in"][i][1],
                             dilation=dil, padding=pad)
        if g_cond is not None:
            in_act = in_act + g_cond[:, i * 2 * H:(i + 1) * 2 * H, :]
        acts = jnp.tanh(in_act[:, :H]) * jax.nn.sigmoid(in_act[:, H:])
        rs = _conv1d_ref(acts, *raw["rs"][i])
        if i < n_layers - 1:
            xc = (xc + rs[:, :H]) * mask
            out = out + rs[:, H:]
        else:
            out = out + rs
    enc = out * mask
    stats = _conv1d_ref(enc, *raw["proj"]) * mask
    m, logs = stats[:, :OC], stats[:, OC:]
    if eps is None:
        eps = jnp.zeros_like(m)
    z = (m + jnp.exp(logs) * t * eps) * mask
    return z, m, logs, mask


if __name__ == "__main__":
    key = jax.random.PRNGKey(0)
    k_param, k_x, k_g, k_eps = jax.random.split(key, 4)

    B, T = 2, 200
    H, OC, gin = 32, 16, 16
    kernel_size, dilation_rate, n_layers = 5, 2, 4
    temp = 0.8

    raw = init_params(k_param, hidden_channels=H, out_channels=OC,
                      kernel_size=kernel_size, dilation_rate=dilation_rate,
                      n_layers=n_layers, gin_channels=gin)
    params = prepare_params(raw)

    x = jax.random.normal(k_x, (B, H, T), jnp.float32)
    g = jax.random.normal(k_g, (B, gin, T), jnp.float32)
    eps = jax.random.normal(k_eps, (B, OC, T), jnp.float32)   # rsample noise
    lengths = jnp.array([T, 150])
    mask = (jnp.arange(T)[None, None, :] < lengths[:, None, None]).astype(jnp.float32)

    z, m, logs, mask_out = prior_nn_forward(x, mask, params, g=g, t=temp, eps=eps)
    z, m, logs = jax.block_until_ready((z, m, logs))

    z_r, m_r, logs_r, _ = ref_forward(x, mask, raw, g=g, t=temp, eps=eps)
    assert z.shape == (B, OC, T) and m.shape == m_r.shape and logs.shape == logs_r.shape

    # bf16-MXU kernel vs f32 reference for the distribution statistics.
    assert np.allclose(np.asarray(m), np.asarray(m_r), atol=2e-2, rtol=2e-2), (
        "m mismatch", float(np.max(np.abs(np.asarray(m) - np.asarray(m_r)))))
    assert np.allclose(np.asarray(logs), np.asarray(logs_r), atol=2e-2, rtol=2e-2), (
        "logs mismatch", float(np.max(np.abs(np.asarray(logs) - np.asarray(logs_r)))))
    # Reparameterized sample must be exactly consistent with the kernel's own m/logs.
    z_self = (np.asarray(m) + np.exp(np.asarray(logs)) * temp * np.asarray(eps)) \
        * np.asarray(mask)
    assert np.allclose(np.asarray(z), z_self, atol=1e-3, rtol=1e-3), (
        "z inconsistent", float(np.max(np.abs(np.asarray(z) - z_self))))

    print("KERNEL_OK")
</pallas_src>

<mosaic_0001>
module attributes {stable_mosaic.version = 11 : i64} {
  func.func @_pointwise_conv_kernel(%arg0: i32, %arg1: i32, %arg2: memref<1x128x16xf32, #tpu.memory_space<vmem>>, %arg3: memref<16x256xbf16, #tpu.memory_space<vmem>>, %arg4: memref<1x256xf32, #tpu.memory_space<vmem>>, %arg5: memref<1x128x256xf32, #tpu.memory_space<vmem>>) attributes {dimension_semantics = [#tpu.dimension_semantics<parallel>, #tpu.dimension_semantics<parallel>], iteration_bounds = array<i64: 2, 2>, scalar_prefetch = 0 : i64, scratch_operands = 0 : i64, tpu.core_type = #tpu.core_type<tc>, window_params = [{transform_indices = @transform_0, window_bounds = array<i64: 1, 128, 16>}, {pipeline_mode = #tpu.pipeline_mode<synchronous>, transform_indices = @transform_1, window_bounds = array<i64: 16, 256>}, {pipeline_mode = #tpu.pipeline_mode<synchronous>, transform_indices = @transform_2, window_bounds = array<i64: 1, 256>}, {transform_indices = @transform_3, window_bounds = array<i64: 1, 128, 256>}]} {
    %c0 = arith.constant 0 : index
    %c0_0 = arith.constant 0 : index
    %c0_1 = arith.constant 0 : index
    %0 = vector.load %arg2[%c0, %c0_0, %c0_1] : memref<1x128x16xf32, #tpu.memory_space<vmem>>, vector<1x128x16xf32>
    %1 = vector.shape_cast %0 : vector<1x128x16xf32> to vector<128x16xf32>
    %2 = arith.truncf %1 : vector<128x16xf32> to vector<128x16xbf16>
    %c0_2 = arith.constant 0 : index
    %c0_3 = arith.constant 0 : index
    %3 = vector.load %arg3[%c0_2, %c0_3] : memref<16x256xbf16, #tpu.memory_space<vmem>>, vector<16x256xbf16>
    %cst = arith.constant dense<0.000000e+00> : vector<128x256xf32>
    %4 = tpu.matmul %2, %3, %cst {dimension_numbers = #tpu.dot_dimension_numbers<[1], [0], [0], [1], [0, 0, 1, 1], [], []>} : vector<128x16xbf16>, vector<16x256xbf16>, vector<128x256xf32> -> vector<128x256xf32>
    %c0_4 = arith.constant 0 : index
    %c0_5 = arith.constant 0 : index
    %5 = vector.load %arg4[%c0_4, %c0_5] : memref<1x256xf32, #tpu.memory_space<vmem>>, vector<1x256xf32>
    %6 = vector.broadcast %5 : vector<1x256xf32> to vector<128x256xf32>
    %7 = arith.addf %4, %6 : vector<128x256xf32>
    %c0_6 = arith.constant 0 : index
    %c0_7 = arith.constant 0 : index
    %c0_8 = arith.constant 0 : index
    %8 = vector.load %arg5[%c0_6, %c0_7, %c0_8] : memref<1x128x256xf32, #tpu.memory_space<vmem>>, vector<1x128x256xf32>
    %9 = vector.shape_cast %8 : vector<1x128x256xf32> to vector<128x256xf32>
    %10 = vector.shape_cast %7 : vector<128x256xf32> to vector<1x128x256xf32>
    tpu.vector_store %arg5[%c0_6, %c0_7, %c0_8], %10 {strides = array<i32>} : memref<1x128x256xf32, #tpu.memory_space<vmem>>, vector<1x128x256xf32>,
    return
  }
  func.func @transform_0(%arg0: i32, %arg1: i32) -> (i32, i32, i32) {
    %c0_i32 = arith.constant 0 : i32
    %c0_i32_0 = arith.constant 0 : i32
    return %arg0, %arg1, %c0_i32 : i32, i32, i32
  }
  func.func @transform_1(%arg0: i32, %arg1: i32) -> (i32, i32) {
    %c0_i32 = arith.constant 0 : i32
    %c0_i32_0 = arith.constant 0 : i32
    %c0_i32_1 = arith.constant 0 : i32
    return %c0_i32, %c0_i32_0 : i32, i32
  }
  func.func @transform_2(%arg0: i32, %arg1: i32) -> (i32, i32) {
    %c0_i32 = arith.constant 0 : i32
    %c0_i32_0 = arith.constant 0 : i32
    %c0_i32_1 = arith.constant 0 : i32
    return %c0_i32, %c0_i32_0 : i32, i32
  }
  func.func @transform_3(%arg0: i32, %arg1: i32) -> (i32, i32, i32) {
    %c0_i32 = arith.constant 0 : i32
    %c0_i32_0 = arith.constant 0 : i32
    return %arg0, %arg1, %c0_i32 : i32, i32, i32
  }
}

</mosaic_0001>

<llo_original>
// kernel: tpu_custom_call.1
$region0: #{tpu_custom_call.1}
  #allocation0 [shape = 'u32[]', space=smem, size = 0x4, offset = 0x4, fixed_abs, tag = 'smem constant byte address 0x4 - core index']
  #allocation1 [shape = 'u32[72,128]{1,0:T(1,128)}', space=vmem, size = 0x9000, scoped, tag = 'internal scratch']
  %s0 = inlined_call_operand.vmem [shape: f32[2,256,16], index: 0, kind: input, shape index: {}]
  %s1 = inlined_call_operand.vmem [shape: bf16[16,256], index: 1, kind: input, shape index: {}]
  %s2 = inlined_call_operand.vmem [shape: f32[1,256], index: 2, kind: input, shape index: {}]
  %s3 = inlined_call_operand.hbm [shape: f32[2,256,256], index: 3, kind: output, shape index: {}]
  %s4 = sld [smem:[#allocation0]]
  $region45: #{tpu_custom_call.1} parent=0
    _
  %s6 = ssub.s32 1, %s4
  %s7 = scalar_select 0, %s6, %s4
  $region1: #{tpu_custom_call.1} parent=0
    #allocation2 [shape = 'u8[262144]{0}', space=vmem, size = 0x40000, scoped, tag = 'output window, operand 0']
    #allocation3 [shape = 's32[2]{0}', space=sflag, size = 0x8, scoped, tag = 'scoped memory for tpu_custom_call.1']
    %8 = vsyncpa [#allocation3], 0
    %s9 = scalar_lea.sflag [#allocation3], 1
    %10 = vsyncpa %s9, 0
    loop: start=0, step=1, limit=6
    $region2: #{tpu_custom_call.1} parent=1 // loop_pre_header
      _
    $region3: #{tpu_custom_call.1} parent=1 // loop_header
      %s12 = sphi 0, %s16
      %p13 = scmp.ge.s32.totalorder %s12, 6
      %s19 = sphi 0, %s31
      %s20 = sphi 0, %s27
      %s21 = sphi 0, %s19
      %s22 = sphi 0, %s20
      %s23 = sphi 0, %s21
      %s24 = sphi 0, %s22
      %s36 = sphi 0, %s38
      %s39 = sphi 0, %s36
      %s40 = sphi 0, %s39
      %s56 = sphi 0, %s40
      %s60 = sphi 0, %s60
      %s62 = sphi 0, %s60
      %s63 = sphi 0, %s62
      %s77 = sphi 0, %s63
      %s81 = sphi 0, %s81
      %s83 = sphi 0, %s81
      %s84 = sphi 0, %s83
      %s98 = sphi 0, %s84
      %s106 = sphi 0, %s108
      %s109 = sphi 0, %s106
      %s110 = sphi 0, %s109
      %s126 = sphi 0, %s110
    $region4: #{tpu_custom_call.1} parent=1 // loop_header_branch
      %15 = sbr.rel (%p13) target = $region8
    $region5: #{tpu_custom_call.1} parent=1 // loop_body
      %s17 = ssub.s32 %s12, 1
      %s18 = ssub.s32 %s12, 2
      %s25 = sadd.s32 1, %s20
      %p26 = scmp.ge.s32.totalorder %s25, 2
      %s27 = scalar_select %p26, 0, %s25
      %s28 = sadd.s32 1, %s19
      %s29 = scalar_select %p26, %s28, %s19
      %p30 = scmp.ge.s32.totalorder %s29, 2
      %s31 = scalar_select %p30, 0, %s29
      %s32 = ssub.s32 %s19, %s31
      %s33 = ssub.s32 %s20, %s27
      %s34 = sor.u32 %s32, %s33
      %p35 = scmp.eq.s32.totalorder %s34, 0
      %s37 = sadd.s32 %s36, 1
      %s38 = scalar_select %p35, %s36, %s37
      %p41 = pneg %p35
      %p42 = scmp.eq.s32.totalorder %s12, 3
      %p43 = por %p41, %p42
      %p44 = scmp.ne.s32.totalorder %s36, %s39
      %p45 = scmp.eq.s32.totalorder %s12, 0
      %p46 = por %p44, %p45
      %p47 = scmp.ne.s32.totalorder %s36, %s39
      %p48 = scmp.eq.s32.totalorder %s17, 3
      %p49 = por %p47, %p48
      %p50 = scmp.ne.s32.totalorder %s39, %s40
      %p51 = scmp.eq.s32.totalorder %s17, 0
      %p52 = por %p50, %p51
      %p53 = scmp.ne.s32.totalorder %s39, %s40
      %p54 = scmp.eq.s32.totalorder %s18, 3
      %p55 = por %p53, %p54
      %p57 = scmp.ne.s32.totalorder %s40, %s56
      %p58 = scmp.eq.s32.totalorder %s18, 0
      %p59 = por %p57, %p58
      %s61 = sadd.s32 %s60, 1
      %p64 = scmp.eq.s32.totalorder %s12, 3
      %p65 = scmp.ne.s32.totalorder %s60, %s62
      %p66 = scmp.eq.s32.totalorder %s12, 0
      %p67 = por %p65, %p66
      %p68 = scmp.ne.s32.totalorder %s60, %s62
      %p69 = scmp.eq.s32.totalorder %s17, 3
      %p70 = por %p68, %p69
      %p71 = scmp.ne.s32.totalorder %s62, %s63
      %p72 = scmp.eq.s32.totalorder %s17, 0
      %p73 = por %p71, %p72
      %p74 = scmp.ne.s32.totalorder %s62, %s63
      %p75 = scmp.eq.s32.totalorder %s18, 3
      %p76 = por %p74, %p75
      %p78 = scmp.ne.s32.totalorder %s63, %s77
      %p79 = scmp.eq.s32.totalorder %s18, 0
      %p80 = por %p78, %p79
      %s82 = sadd.s32 %s81, 1
      %p85 = scmp.eq.s32.totalorder %s12, 3
      %p86 = scmp.ne.s32.totalorder %s81, %s83
      %p87 = scmp.eq.s32.totalorder %s12, 0
      %p88 = por %p86, %p87
      %p89 = scmp.ne.s32.totalorder %s81, %s83
      %p90 = scmp.eq.s32.totalorder %s17, 3
      %p91 = por %p89, %p90
      %p92 = scmp.ne.s32.totalorder %s83, %s84
      %p93 = scmp.eq.s32.totalorder %s17, 0
      %p94 = por %p92, %p93
      %p95 = scmp.ne.s32.totalorder %s83, %s84
      %p96 = scmp.eq.s32.totalorder %s18, 3
      %p97 = por %p95, %p96
      %p99 = scmp.ne.s32.totalorder %s84, %s98
      %p100 = scmp.eq.s32.totalorder %s18, 0
      %p101 = por %p99, %p100
      %s102 = ssub.s32 %s19, %s31
      %s103 = ssub.s32 %s20, %s27
      %s104 = sor.u32 %s102, %s103
      %p105 = scmp.eq.s32.totalorder %s104, 0
      %s107 = sadd.s32 %s106, 1
      %s108 = scalar_select %p105, %s106, %s107
      %p111 = pneg %p105
      %p112 = scmp.eq.s32.totalorder %s12, 3
      %p113 = por %p111, %p112
      %p114 = scmp.ne.s32.totalorder %s106, %s109
      %p115 = scmp.eq.s32.totalorder %s12, 0
      %p116 = por %p114, %p115
      %p117 = scmp.ne.s32.totalorder %s106, %s109
      %p118 = scmp.eq.s32.totalorder %s17, 3
      %p119 = por %p117, %p118
      %p120 = scmp.ne.s32.totalorder %s109, %s110
      %p121 = scmp.eq.s32.totalorder %s17, 0
      %p122 = por %p120, %p121
      %p123 = scmp.ne.s32.totalorder %s109, %s110
      %p124 = scmp.eq.s32.totalorder %s18, 3
      %p125 = por %p123, %p124
      %p127 = scmp.ne.s32.totalorder %s110, %s126
      %p128 = scmp.eq.s32.totalorder %s18, 0
      %p129 = por %p127, %p128
      %p130 = scmp.le.s32.totalorder 1, %s12
      %p131 = scmp.lt.s32.totalorder %s12, 5
      %p132 = pnand %p130, %p131
      %p133 = pneg %p132
      // Predicated region
      $region9: #{tpu_custom_call.1} parent=5 // pred_check
        _
      $region10: #{tpu_custom_call.1} parent=5 // pred_check_branch
        %135 = sbr.rel (%p132) target = $region12
      $region11: #{tpu_custom_call.1} parent=5 // pred_region
        %s136 = ssub.s32 %s12, 1
        // Predicated region
        $region13: #{tpu_custom_call.1} parent=11 // pred_check
          %p137 = pneg %p73
        $region14: #{tpu_custom_call.1} parent=11 // pred_check_branch
          %139 = sbr.rel (%p137) target = $region16
        $region15: #{tpu_custom_call.1} parent=11 // pred_region
          _
        $region16: #{tpu_custom_call.1} parent=11 // pred_fallthru
          _
        // Predicated region
        $region17: #{tpu_custom_call.1} parent=11 // pred_check
          %p140 = pneg %p94
        $region18: #{tpu_custom_call.1} parent=11 // pred_check_branch
          %142 = sbr.rel (%p140) target = $region20
        $region19: #{tpu_custom_call.1} parent=11 // pred_region
          _
        $region20: #{tpu_custom_call.1} parent=11 // pred_fallthru
          _
      $region12: #{tpu_custom_call.1} parent=5 // pred_fallthru
        _
      %p143 = scmp.lt.s32.totalorder %s12, 4
      // Predicated region
      $region21: #{tpu_custom_call.1} parent=5 // pred_check
        %p144 = pneg %p143
      $region22: #{tpu_custom_call.1} parent=5 // pred_check_branch
        %146 = sbr.rel (%p144) target = $region24
      $region23: #{tpu_custom_call.1} parent=5 // pred_region
        // Predicated region
        $region25: #{tpu_custom_call.1} parent=23 // pred_check
          %p147 = pneg %p46
        $region26: #{tpu_custom_call.1} parent=23 // pred_check_branch
          %149 = sbr.rel (%p147) target = $region28
        $region27: #{tpu_custom_call.1} parent=23 // pred_region
          %s150 = smul.u32 16, %s20
          %p151 = scmp.lt.s32.totalorder %s19, 1
          %s152 = scalar_select %p151, %s19, 1
          %p153 = scmp.lt.s32.totalorder %s150, 31
          %s154 = scalar_select %p153, %s150, 31
          %s155 = smul.addr %s152, 32
          %s156 = sadd.s32 %s154, %s155
          %s157 = smul.addr %s156, 8
          %s158 = scalar_lea.vmem %s0, %s157
          %s159 = smul.u32 16, %s20
        $region28: #{tpu_custom_call.1} parent=23 // pred_fallthru
          _
      $region24: #{tpu_custom_call.1} parent=5 // pred_fallthru
        _
      %p160 = scmp.le.s32.totalorder 1, %s12
      %p161 = scmp.lt.s32.totalorder %s12, 5
      %p162 = pnand %p160, %p161
      %p163 = pneg %p162
      // Predicated region
      $region29: #{tpu_custom_call.1} parent=5 // pred_check
        _
      $region30: #{tpu_custom_call.1} parent=5 // pred_check_branch
        %165 = sbr.rel (%p162) target = $region32
      $region31: #{tpu_custom_call.1} parent=5 // pred_region
        %s166 = ssub.s32 %s12, 1
        %s167 = smul.u32 16, %s22
        %p168 = scmp.lt.s32.totalorder %s21, 1
        %s169 = scalar_select %p168, %s21, 1
        %p170 = scmp.lt.s32.totalorder %s167, 31
        %s171 = scalar_select %p170, %s167, 31
        %s172 = smul.addr %s169, 32
        %s173 = sadd.s32 %s171, %s172
        %s174 = smul.addr %s173, 8
        %s175 = scalar_lea.vmem %s0, %s174
        %p176 = pneg %p52
        %p177 = pneg %p49
        %p178 = pneg %p73
        %p179 = pneg %p70
        %p180 = pneg %p94
        %p181 = pneg %p91
        %p182 = pneg %p122
        %p183 = pneg %p119
        %s184 = sand.u32 %s109, 1
        %s185 = scalar_lea.sflag [#allocation3], %s184
        %s186 = sand.u32 %s109, 1
        %s187 = smul.addr %s186, 256
        %s188 = scalar_lea.vmem [#allocation2], %s187
        %s189 = smul.u32 16, %s22
        %p190 = scmp.lt.s32.totalorder %s21, 1
        %s191 = scalar_select %p190, %s21, 1
        %p192 = scmp.lt.s32.totalorder %s189, 31
        %s193 = scalar_select %p192, %s189, 31
        %s194 = smul.addr %s191, 32
        %s195 = sadd.s32 %s193, %s194
        %s196 = smul.addr %s195, 8
        %s197 = scalar_lea.vmem %s0, %s196
        %s198 = smul.u32 16, %s22
        %s199 = smul.u32 16, %s22
        %v201 = vld [vmem:[%s197] sm:$0xff]
        %v202 = vld [vmem:[%s197 + $0x8] sm:$0xff]
        %v203 = vld [vmem:[%s197 + $0x10] sm:$0xff]
        %v204 = vld [vmem:[%s197 + $0x18] sm:$0xff]
        %v205 = vld [vmem:[%s197 + $0x20] sm:$0xff]
        %v206 = vld [vmem:[%s197 + $0x28] sm:$0xff]
        %v207 = vld [vmem:[%s197 + $0x30] sm:$0xff]
        %v208 = vld [vmem:[%s197 + $0x38] sm:$0xff]
        %v209 = vld [vmem:[%s197 + $0x40] sm:$0xff]
        %v210 = vld [vmem:[%s197 + $0x48] sm:$0xff]
        %v211 = vld [vmem:[%s197 + $0x50] sm:$0xff]
        %v212 = vld [vmem:[%s197 + $0x58] sm:$0xff]
        %v213 = vld [vmem:[%s197 + $0x60] sm:$0xff]
        %v214 = vld [vmem:[%s197 + $0x68] sm:$0xff]
        %v215 = vld [vmem:[%s197 + $0x70] sm:$0xff]
        %v216 = vld [vmem:[%s197 + $0x78] sm:$0xff]
        %v217 = vpack.c.bf16 %v202, %v201
        %v218 = vpack.c.bf16 %v204, %v203
        %v219 = vpack.c.bf16 %v206, %v205
        %v220 = vpack.c.bf16 %v208, %v207
        %v221 = vpack.c.bf16 %v210, %v209
        %v222 = vpack.c.bf16 %v212, %v211
        %v223 = vpack.c.bf16 %v214, %v213
        %v224 = vpack.c.bf16 %v216, %v215
        %v225 = vld [vmem:[%s1] sm:$0xff]
        %v226 = vld [vmem:[%s1 + $0x8] sm:$0xff]
        %v227 = vld [vmem:[%s2] sm:$0x3]
        %v229 = vperm.slane %v227, 0
        %v230 = vperm.slane %v227, 1
        %v235 = vunpack.c.l.b16 %v225
        %v236 = vunpack.c.h.b16 %v225
        %v237 = vunpack.c.l.b16 %v226
        %v238 = vunpack.c.h.b16 %v226
        %v239 = vpack.c.b16 %v237, %v235
        %v240 = vpack.c.b16 %v238, %v236
        %vm243 = vcmask 130048
        %v245 = vsel %vm243, %v217, 0
        %v248 = vsel %vm243, %v218, 0
        %v251 = vsel %vm243, %v219, 0
        %v254 = vsel %vm243, %v220, 0
        %v257 = vsel %vm243, %v221, 0
        %v260 = vsel %vm243, %v222, 0
        %v263 = vsel %vm243, %v223, 0
        %v266 = vsel %vm243, %v224, 0
        %268 = vmatpush.bf16.msra.mxu0 0
        %269 = vmatpush.bf16.msra.mxu0 0
        %270 = vmatpush.bf16.msra.mxu0 0
        %271 = vmatpush.bf16.msra.mxu0 0
        %272 = vmatpush.bf16.msra.mxu0 0
        %273 = vmatpush.bf16.msra.mxu0 0
        %274 = vmatpush.bf16.msra.mxu0 0
        %275 = vmatpush.bf16.msra.mxu0 %v239
        %276 = vmatmul.bf16.gmra.mxu0 %v245
        %v277 = vpop.f32.mrf.mxu0
        %v278 = vadd.f32 %v229, %v277
        %v279 = vpop.f32.mrf.mxu0
        %v280 = vadd.f32 %v229, %v279
        %281 = vmatmul.bf16.gmra.mxu0 %v248
        %v282 = vpop.f32.mrf.mxu0
        %v283 = vadd.f32 %v229, %v282
        %v284 = vpop.f32.mrf.mxu0
        %v285 = vadd.f32 %v229, %v284
        %286 = vmatmul.bf16.gmra.mxu0 %v251
        %v287 = vpop.f32.mrf.mxu0
        %v288 = vadd.f32 %v229, %v287
        %v289 = vpop.f32.mrf.mxu0
        %v290 = vadd.f32 %v229, %v289
        %291 = vmatmul.bf16.gmra.mxu0 %v254
        %v292 = vpop.f32.mrf.mxu0
        %v293 = vadd.f32 %v229, %v292
        %v294 = vpop.f32.mrf.mxu0
        %v295 = vadd.f32 %v229, %v294
        %296 = vmatmul.bf16.gmra.mxu0 %v257
        %v297 = vpop.f32.mrf.mxu0
        %v298 = vadd.f32 %v229, %v297
        %v299 = vpop.f32.mrf.mxu0
        %v300 = vadd.f32 %v229, %v299
        %301 = vmatmul.bf16.gmra.mxu0 %v260
        %v302 = vpop.f32.mrf.mxu0
        %v303 = vadd.f32 %v229, %v302
        %v304 = vpop.f32.mrf.mxu0
        %v305 = vadd.f32 %v229, %v304
        %306 = vmatmul.bf16.gmra.mxu0 %v263
        %v307 = vpop.f32.mrf.mxu0
        %v308 = vadd.f32 %v229, %v307
        %v309 = vpop.f32.mrf.mxu0
        %v310 = vadd.f32 %v229, %v309
        %311 = vmatmul.bf16.gmra.mxu0 %v266
        %v312 = vpop.f32.mrf.mxu0
        %v313 = vadd.f32 %v229, %v312
        %v314 = vpop.f32.mrf.mxu0
        %v315 = vadd.f32 %v229, %v314
        %316 = vdwg.mxu0
        %317 = vmatpush.bf16.msra.mxu0 0
        %318 = vmatpush.bf16.msra.mxu0 0
        %319 = vmatpush.bf16.msra.mxu0 0
        %320 = vmatpush.bf16.msra.mxu0 0
        %321 = vmatpush.bf16.msra.mxu0 0
        %322 = vmatpush.bf16.msra.mxu0 0
        %323 = vmatpush.bf16.msra.mxu0 0
        %324 = vmatpush.bf16.msra.mxu0 %v240
        %325 = vmatmul.bf16.gmra.mxu0 %v245
        %v326 = vpop.f32.mrf.mxu0
        %v327 = vadd.f32 %v230, %v326
        %v328 = vpop.f32.mrf.mxu0
        %v329 = vadd.f32 %v230, %v328
        %330 = vmatmul.bf16.gmra.mxu0 %v248
        %v331 = vpop.f32.mrf.mxu0
        %v332 = vadd.f32 %v230, %v331
        %v333 = vpop.f32.mrf.mxu0
        %v334 = vadd.f32 %v230, %v333
        %335 = vmatmul.bf16.gmra.mxu0 %v251
        %v336 = vpop.f32.mrf.mxu0
        %v337 = vadd.f32 %v230, %v336
        %v338 = vpop.f32.mrf.mxu0
        %v339 = vadd.f32 %v230, %v338
        %340 = vmatmul.bf16.gmra.mxu0 %v254
        %v341 = vpop.f32.mrf.mxu0
        %v342 = vadd.f32 %v230, %v341
        %v343 = vpop.f32.mrf.mxu0
        %v344 = vadd.f32 %v230, %v343
        %345 = vmatmul.bf16.gmra.mxu0 %v257
        %v346 = vpop.f32.mrf.mxu0
        %v347 = vadd.f32 %v230, %v346
        %v348 = vpop.f32.mrf.mxu0
        %v349 = vadd.f32 %v230, %v348
        %350 = vmatmul.bf16.gmra.mxu0 %v260
        %v351 = vpop.f32.mrf.mxu0
        %v352 = vadd.f32 %v230, %v351
        %v353 = vpop.f32.mrf.mxu0
        %v354 = vadd.f32 %v230, %v353
        %355 = vmatmul.bf16.gmra.mxu0 %v263
        %v356 = vpop.f32.mrf.mxu0
        %v357 = vadd.f32 %v230, %v356
        %v358 = vpop.f32.mrf.mxu0
        %v359 = vadd.f32 %v230, %v358
        %360 = vmatmul.bf16.gmra.mxu0 %v266
        %v361 = vpop.f32.mrf.mxu0
        %v362 = vadd.f32 %v230, %v361
        %v363 = vpop.f32.mrf.mxu0
        %v364 = vadd.f32 %v230, %v363
        %365 = vdwg.mxu0
        %366 = vst [vmem:[%s188] sm:$0xff] %v278
        %367 = vst [vmem:[%s188 + $0x8] sm:$0xff] %v327
        %368 = vst [vmem:[%s188 + $0x10] sm:$0xff] %v280
        %369 = vst [vmem:[%s188 + $0x18] sm:$0xff] %v329
        %370 = vst [vmem:[%s188 + $0x20] sm:$0xff] %v283
        %371 = vst [vmem:[%s188 + $0x28] sm:$0xff] %v332
        %372 = vst [vmem:[%s188 + $0x30] sm:$0xff] %v285
        %373 = vst [vmem:[%s188 + $0x38] sm:$0xff] %v334
        %374 = vst [vmem:[%s188 + $0x40] sm:$0xff] %v288
        %375 = vst [vmem:[%s188 + $0x48] sm:$0xff] %v337
        %376 = vst [vmem:[%s188 + $0x50] sm:$0xff] %v290
        %377 = vst [vmem:[%s188 + $0x58] sm:$0xff] %v339
        %378 = vst [vmem:[%s188 + $0x60] sm:$0xff] %v293
        %379 = vst [vmem:[%s188 + $0x68] sm:$0xff] %v342
        %380 = vst [vmem:[%s188 + $0x70] sm:$0xff] %v295
        %381 = vst [vmem:[%s188 + $0x78] sm:$0xff] %v344
        %382 = vst [vmem:[%s188 + $0x80] sm:$0xff] %v298
        %383 = vst [vmem:[%s188 + $0x88] sm:$0xff] %v347
        %384 = vst [vmem:[%s188 + $0x90] sm:$0xff] %v300
        %385 = vst [vmem:[%s188 + $0x98] sm:$0xff] %v349
        %386 = vst [vmem:[%s188 + $0xa0] sm:$0xff] %v303
        %387 = vst [vmem:[%s188 + $0xa8] sm:$0xff] %v352
        %388 = vst [vmem:[%s188 + $0xb0] sm:$0xff] %v305
        %389 = vst [vmem:[%s188 + $0xb8] sm:$0xff] %v354
        %390 = vst [vmem:[%s188 + $0xc0] sm:$0xff] %v308
        %391 = vst [vmem:[%s188 + $0xc8] sm:$0xff] %v357
        %392 = vst [vmem:[%s188 + $0xd0] sm:$0xff] %v310
        %393 = vst [vmem:[%s188 + $0xd8] sm:$0xff] %v359
        %394 = vst [vmem:[%s188 + $0xe0] sm:$0xff] %v313
        %395 = vst [vmem:[%s188 + $0xe8] sm:$0xff] %v362
        %396 = vst [vmem:[%s188 + $0xf0] sm:$0xff] %v315
        %397 = vst [vmem:[%s188 + $0xf8] sm:$0xff] %v364
        %s398 = sand.u32 %s109, 1
        %s399 = scalar_lea.sflag [#allocation3], %s398
        %s400 = sand.u32 %s109, 1
        %s401 = smul.addr %s400, 256
        %s402 = scalar_lea.vmem [#allocation2], %s401
        // Predicated region
        $region33: #{tpu_custom_call.1} parent=31 // pred_check
          %p403 = pneg %p119
        $region34: #{tpu_custom_call.1} parent=31 // pred_check_branch
          %405 = sbr.rel (%p403) target = $region36
        $region35: #{tpu_custom_call.1} parent=31 // pred_region
          %s406 = smul.u32 16, %s22
          %408 = vsyncadd %s399, 0
          %s409 = smul.addr %s406, 2
          %s410 = smul.addr %s21, 64
          %s411 = sadd.s32 %s409, %s410
          %s412 = smul.addr %s411, 8
          %s413 = scalar_lea.hbm %s3, %s412
          %s414 = sshll.u32 %s402, 4
          %s415 = int_to_ptr.vmem [resolvable:$true] %s414
          %s416 = sshll.u32 %s413, 4
          %s417 = int_to_ptr.hbm [resolvable:$true] %s416
          %422 = dma.vmem_to_hbm [thread:$0]  %s415, 4096, %s417, %s399, 256, 256, 16
        $region36: #{tpu_custom_call.1} parent=31 // pred_fallthru
          _
      $region32: #{tpu_custom_call.1} parent=5 // pred_fallthru
        _
      %p423 = scmp.le.s32.totalorder 2, %s12
      // Predicated region
      $region37: #{tpu_custom_call.1} parent=5 // pred_check
        %p424 = pneg %p423
      $region38: #{tpu_custom_call.1} parent=5 // pred_check_branch
        %426 = sbr.rel (%p424) target = $region40
      $region39: #{tpu_custom_call.1} parent=5 // pred_region
        %s427 = ssub.s32 %s12, 2
        // Predicated region
        $region41: #{tpu_custom_call.1} parent=39 // pred_check
          %p428 = pneg %p125
        $region42: #{tpu_custom_call.1} parent=39 // pred_check_branch
          %430 = sbr.rel (%p428) target = $region44
        $region43: #{tpu_custom_call.1} parent=39 // pred_region
          %s431 = sand.u32 %s110, 1
          %s432 = scalar_lea.sflag [#allocation3], %s431
          %s433 = sand.u32 %s110, 1
          %s434 = smul.addr %s433, 256
          %s435 = scalar_lea.vmem [#allocation2], %s434
          %437 = dma.done %s432, 4096
        $region44: #{tpu_custom_call.1} parent=39 // pred_fallthru
          _
      $region40: #{tpu_custom_call.1} parent=5 // pred_fallthru
        _
    $region6: #{tpu_custom_call.1} parent=1 // loop_footer
      %s16 = sadd.s32 1, %s12
    $region7: #{tpu_custom_call.1} parent=1 // loop_footer_branch
      %11 = sbr.rel target = $region3
    $region8: #{tpu_custom_call.1} parent=1 // loop_exit
      _
    %438 = vsyncpa [#allocation3], 1
    %s439 = scalar_lea.sflag [#allocation3], 1
    %440 = vsyncpa %s439, 1

</llo_original>
